<compile_context>
chip_gen: v7x
topology: tpu7x:2x2x1
jax: 0.10.0
libtpu: 0.0.40
codegen_flags: <defaults>
</compile_context>

<pallas_src>
import jax
import jax.numpy as jnp
from jax.experimental import pallas as pl
from jax.experimental.pallas import tpu as pltpu

# ---------------- model dims ----------------
VOCAB = 32
EMB = 16          # embedding_dim
HID = 32          # hidden_dim
BATCH = 2
SEQ = 8           # max_caption_length
# rnn_layer=1, bidirectional=False


def lstm_last_step_kernel(tok_ref, emb_ref, wih_ref, whh_ref, b_ref, out_ref):
    """Single-shot kernel: embedding gather + full LSTM recurrence + last step.

    tok_ref : (T*B, 1) int32   time-major flattened token ids (row = t*B + b)
    emb_ref : (V, E)   f32     embedding table
    wih_ref : (E, 4H)  f32     input->hidden weights, transposed (gate order i,f,g,o)
    whh_ref : (H, 4H)  f32     hidden->hidden weights, transposed
    b_ref   : (1, 4H)  f32     combined bias (b_ih + b_hh)
    out_ref : (B, H)   f32     hidden state of the last time step
    """
    TB = tok_ref.shape[0]
    B = out_ref.shape[0]
    H = out_ref.shape[1]
    V = emb_ref.shape[0]
    T = TB // B

    # ---- fused embedding lookup: one-hot(tokens) @ table, on the MXU ----
    tokens = tok_ref[...]                                            # (T*B, 1) int32
    one_hot = (tokens == jax.lax.broadcasted_iota(jnp.int32, (TB, V), 1)
               ).astype(jnp.float32)                                 # (T*B, V)
    x_all = jnp.dot(one_hot, emb_ref[...],
                    preferred_element_type=jnp.float32)              # (T*B, E)

    # ---- hoisted input projection + bias for ALL time steps (one matmul) ----
    gates_x = jnp.dot(x_all, wih_ref[...],
                      preferred_element_type=jnp.float32) + b_ref[...]  # (T*B, 4H)

    whh = whh_ref[...]                                               # (H, 4H)

    # ---- recurrence: h, c carried in vregs, unrolled over T ----
    h = jnp.zeros((B, H), jnp.float32)
    c = jnp.zeros((B, H), jnp.float32)
    for t in range(T):                       # static unroll (T is tiny)
        g = gates_x[t * B:(t + 1) * B, :] + jnp.dot(
            h, whh, preferred_element_type=jnp.float32)              # (B, 4H)
        i_g = jax.nn.sigmoid(g[:, 0 * H:1 * H])
        f_g = jax.nn.sigmoid(g[:, 1 * H:2 * H])
        g_g = jnp.tanh(g[:, 2 * H:3 * H])
        o_g = jax.nn.sigmoid(g[:, 3 * H:4 * H])
        c = f_g * c + i_g * g_g
        h = o_g * jnp.tanh(c)

    # out[:, -1, :]  -> only the last time step's hidden state is emitted
    out_ref[...] = h.astype(out_ref.dtype)


def caption_model_forward(sentence, embedding, w_ih, w_hh, b_ih, b_hh):
    """sentence: (B, T) int32 token ids.  Returns (B, H) float32."""
    B, T = sentence.shape

    # Tiny (64-byte) layout prep: time-major flat token column (row = t*B + b).
    sentence_tm = jnp.transpose(sentence).reshape(T * B, 1).astype(jnp.int32)

    wih_t = jnp.transpose(w_ih).astype(jnp.float32)      # (E, 4H)
    whh_t = jnp.transpose(w_hh).astype(jnp.float32)      # (H, 4H)
    bias = (b_ih + b_hh).reshape(1, 4 * HID).astype(jnp.float32)

    vmem = pl.BlockSpec(memory_space=pltpu.MemorySpace.VMEM)
    out = pl.pallas_call(
        lstm_last_step_kernel,
        out_shape=jax.ShapeDtypeStruct((B, HID), jnp.float32),
        in_specs=[vmem, vmem, vmem, vmem, vmem],
        out_specs=pl.BlockSpec(memory_space=pltpu.MemorySpace.VMEM),
    )(sentence_tm, embedding.astype(jnp.float32), wih_t, whh_t, bias)
    return out


def reference_forward(sentence, embedding, w_ih, w_hh, b_ih, b_hh):
    """Pure-JAX reference of the same semantics (batch_first LSTM, h0=c0=0)."""
    x = jnp.take(embedding, sentence, axis=0).astype(jnp.float32)  # (B, T, E)
    B, T, _ = x.shape
    h = jnp.zeros((B, HID), jnp.float32)
    c = jnp.zeros((B, HID), jnp.float32)
    for t in range(T):
        gates = x[:, t, :] @ w_ih.T + b_ih + h @ w_hh.T + b_hh
        i_g = jax.nn.sigmoid(gates[:, 0 * HID:1 * HID])
        f_g = jax.nn.sigmoid(gates[:, 1 * HID:2 * HID])
        g_g = jnp.tanh(gates[:, 2 * HID:3 * HID])
        o_g = jax.nn.sigmoid(gates[:, 3 * HID:4 * HID])
        c = f_g * c + i_g * g_g
        h = o_g * jnp.tanh(c)
    return h


if __name__ == "__main__":
    key = jax.random.PRNGKey(0)
    k_tok, k_emb, k_wih, k_whh, k_bih, k_bhh = jax.random.split(key, 6)

    sentence = jax.random.randint(k_tok, (BATCH, SEQ), 0, VOCAB, dtype=jnp.int32)
    embedding = jax.random.normal(k_emb, (VOCAB, EMB), jnp.float32) * 0.1
    w_ih = jax.random.normal(k_wih, (4 * HID, EMB), jnp.float32) * 0.1
    w_hh = jax.random.normal(k_whh, (4 * HID, HID), jnp.float32) * 0.1
    b_ih = jax.random.normal(k_bih, (4 * HID,), jnp.float32) * 0.1
    b_hh = jax.random.normal(k_bhh, (4 * HID,), jnp.float32) * 0.1

    out = caption_model_forward(sentence, embedding, w_ih, w_hh, b_ih, b_hh)
    out = jax.block_until_ready(out)

    ref = reference_forward(sentence, embedding, w_ih, w_hh, b_ih, b_hh)
    assert out.shape == (BATCH, HID)
    assert jnp.allclose(out, ref, atol=1e-5, rtol=1e-5), "mismatch vs reference"

    print("KERNEL_OK")
</pallas_src>

<mosaic_0001>
module attributes {stable_mosaic.version = 11 : i64} {
  func.func @lstm_last_step_kernel(%arg0: memref<16x1xi32, #tpu.memory_space<vmem>>, %arg1: memref<32x16xf32, #tpu.memory_space<vmem>>, %arg2: memref<16x128xf32, #tpu.memory_space<vmem>>, %arg3: memref<32x128xf32, #tpu.memory_space<vmem>>, %arg4: memref<1x128xf32, #tpu.memory_space<vmem>>, %arg5: memref<2x32xf32, #tpu.memory_space<vmem>>) attributes {dimension_semantics = [], scalar_prefetch = 0 : i64, scratch_operands = 0 : i64, tpu.core_type = #tpu.core_type<tc>} {
    %c0 = arith.constant 0 : index
    %c0_0 = arith.constant 0 : index
    %0 = vector.load %arg0[%c0, %c0_0] : memref<16x1xi32, #tpu.memory_space<vmem>>, vector<16x1xi32>
    %1 = tpu.iota {dimensions = array<i32: 1>} : vector<16x32xi32>
    %2 = vector.broadcast %0 : vector<16x1xi32> to vector<16x32xi32>
    %3 = arith.cmpi eq, %2, %1 : vector<16x32xi32>
    %4 = arith.extui %3 : vector<16x32xi1> to vector<16x32xi32>
    %5 = arith.sitofp %4 : vector<16x32xi32> to vector<16x32xf32>
    %c0_1 = arith.constant 0 : index
    %c0_2 = arith.constant 0 : index
    %6 = vector.load %arg1[%c0_1, %c0_2] : memref<32x16xf32, #tpu.memory_space<vmem>>, vector<32x16xf32>
    %cst = arith.constant dense<0.000000e+00> : vector<16x16xf32>
    %7 = tpu.matmul %5, %6, %cst {dimension_numbers = #tpu.dot_dimension_numbers<[1], [0], [0], [1], [0, 0, 1, 1], [], []>} : vector<16x32xf32>, vector<32x16xf32>, vector<16x16xf32> -> vector<16x16xf32>
    %c0_3 = arith.constant 0 : index
    %c0_4 = arith.constant 0 : index
    %8 = vector.load %arg2[%c0_3, %c0_4] : memref<16x128xf32, #tpu.memory_space<vmem>>, vector<16x128xf32>
    %cst_5 = arith.constant dense<0.000000e+00> : vector<16x128xf32>
    %9 = tpu.matmul %7, %8, %cst_5 {dimension_numbers = #tpu.dot_dimension_numbers<[1], [0], [0], [1], [0, 0, 1, 1], [], []>} : vector<16x16xf32>, vector<16x128xf32>, vector<16x128xf32> -> vector<16x128xf32>
    %c0_6 = arith.constant 0 : index
    %c0_7 = arith.constant 0 : index
    %10 = vector.load %arg4[%c0_6, %c0_7] : memref<1x128xf32, #tpu.memory_space<vmem>>, vector<1x128xf32>
    %11 = vector.broadcast %10 : vector<1x128xf32> to vector<16x128xf32>
    %12 = arith.addf %9, %11 : vector<16x128xf32>
    %c0_8 = arith.constant 0 : index
    %c0_9 = arith.constant 0 : index
    %13 = vector.load %arg3[%c0_8, %c0_9] : memref<32x128xf32, #tpu.memory_space<vmem>>, vector<32x128xf32>
    %cst_10 = arith.constant 0.000000e+00 : f32
    %14 = vector.broadcast %cst_10 : f32 to vector<2x32xf32>
    %cst_11 = arith.constant 0.000000e+00 : f32
    %15 = vector.broadcast %cst_11 : f32 to vector<2x32xf32>
    %16 = vector.extract_strided_slice %12 {offsets = [0, 0], sizes = [2, 128], strides = [1, 1]} : vector<16x128xf32> to vector<2x128xf32>
    %cst_12 = arith.constant dense<0.000000e+00> : vector<2x128xf32>
    %17 = tpu.matmul %14, %13, %cst_12 {dimension_numbers = #tpu.dot_dimension_numbers<[1], [0], [0], [1], [0, 0, 1, 1], [], []>} : vector<2x32xf32>, vector<32x128xf32>, vector<2x128xf32> -> vector<2x128xf32>
    %18 = arith.addf %16, %17 : vector<2x128xf32>
    %19 = vector.extract_strided_slice %18 {offsets = [0, 0], sizes = [2, 32], strides = [1, 1]} : vector<2x128xf32> to vector<2x32xf32>
    %20 = arith.negf %19 : vector<2x32xf32>
    %21 = math.exp %20 : vector<2x32xf32>
    %cst_13 = arith.constant 1.000000e+00 : f32
    %22 = vector.broadcast %cst_13 : f32 to vector<2x32xf32>
    %23 = arith.addf %22, %21 : vector<2x32xf32>
    %24 = arith.divf %22, %23 : vector<2x32xf32>
    %25 = vector.extract_strided_slice %18 {offsets = [0, 32], sizes = [2, 32], strides = [1, 1]} : vector<2x128xf32> to vector<2x32xf32>
    %26 = arith.negf %25 : vector<2x32xf32>
    %27 = math.exp %26 : vector<2x32xf32>
    %cst_14 = arith.constant 1.000000e+00 : f32
    %28 = vector.broadcast %cst_14 : f32 to vector<2x32xf32>
    %29 = arith.addf %28, %27 : vector<2x32xf32>
    %30 = arith.divf %28, %29 : vector<2x32xf32>
    %31 = vector.extract_strided_slice %18 {offsets = [0, 64], sizes = [2, 32], strides = [1, 1]} : vector<2x128xf32> to vector<2x32xf32>
    %32 = math.tanh %31 : vector<2x32xf32>
    %33 = vector.extract_strided_slice %18 {offsets = [0, 96], sizes = [2, 32], strides = [1, 1]} : vector<2x128xf32> to vector<2x32xf32>
    %34 = arith.negf %33 : vector<2x32xf32>
    %35 = math.exp %34 : vector<2x32xf32>
    %cst_15 = arith.constant 1.000000e+00 : f32
    %36 = vector.broadcast %cst_15 : f32 to vector<2x32xf32>
    %37 = arith.addf %36, %35 : vector<2x32xf32>
    %38 = arith.divf %36, %37 : vector<2x32xf32>
    %39 = arith.mulf %30, %15 : vector<2x32xf32>
    %40 = arith.mulf %24, %32 : vector<2x32xf32>
    %41 = arith.addf %39, %40 : vector<2x32xf32>
    %42 = math.tanh %41 : vector<2x32xf32>
    %43 = arith.mulf %38, %42 : vector<2x32xf32>
    %44 = vector.extract_strided_slice %12 {offsets = [2, 0], sizes = [2, 128], strides = [1, 1]} : vector<16x128xf32> to vector<2x128xf32>
    %cst_16 = arith.constant dense<0.000000e+00> : vector<2x128xf32>
    %45 = tpu.matmul %43, %13, %cst_16 {dimension_numbers = #tpu.dot_dimension_numbers<[1], [0], [0], [1], [0, 0, 1, 1], [], []>} : vector<2x32xf32>, vector<32x128xf32>, vector<2x128xf32> -> vector<2x128xf32>
    %46 = arith.addf %44, %45 : vector<2x128xf32>
    %47 = vector.extract_strided_slice %46 {offsets = [0, 0], sizes = [2, 32], strides = [1, 1]} : vector<2x128xf32> to vector<2x32xf32>
    %48 = arith.negf %47 : vector<2x32xf32>
    %49 = math.exp %48 : vector<2x32xf32>
    %cst_17 = arith.constant 1.000000e+00 : f32
    %50 = vector.broadcast %cst_17 : f32 to vector<2x32xf32>
    %51 = arith.addf %50, %49 : vector<2x32xf32>
    %52 = arith.divf %50, %51 : vector<2x32xf32>
    %53 = vector.extract_strided_slice %46 {offsets = [0, 32], sizes = [2, 32], strides = [1, 1]} : vector<2x128xf32> to vector<2x32xf32>
    %54 = arith.negf %53 : vector<2x32xf32>
    %55 = math.exp %54 : vector<2x32xf32>
    %cst_18 = arith.constant 1.000000e+00 : f32
    %56 = vector.broadcast %cst_18 : f32 to vector<2x32xf32>
    %57 = arith.addf %56, %55 : vector<2x32xf32>
    %58 = arith.divf %56, %57 : vector<2x32xf32>
    %59 = vector.extract_strided_slice %46 {offsets = [0, 64], sizes = [2, 32], strides = [1, 1]} : vector<2x128xf32> to vector<2x32xf32>
    %60 = math.tanh %59 : vector<2x32xf32>
    %61 = vector.extract_strided_slice %46 {offsets = [0, 96], sizes = [2, 32], strides = [1, 1]} : vector<2x128xf32> to vector<2x32xf32>
    %62 = arith.negf %61 : vector<2x32xf32>
    %63 = math.exp %62 : vector<2x32xf32>
    %cst_19 = arith.constant 1.000000e+00 : f32
    %64 = vector.broadcast %cst_19 : f32 to vector<2x32xf32>
    %65 = arith.addf %64, %63 : vector<2x32xf32>
    %66 = arith.divf %64, %65 : vector<2x32xf32>
    %67 = arith.mulf %58, %41 : vector<2x32xf32>
    %68 = arith.mulf %52, %60 : vector<2x32xf32>
    %69 = arith.addf %67, %68 : vector<2x32xf32>
    %70 = math.tanh %69 : vector<2x32xf32>
    %71 = arith.mulf %66, %70 : vector<2x32xf32>
    %72 = vector.extract_strided_slice %12 {offsets = [4, 0], sizes = [2, 128], strides = [1, 1]} : vector<16x128xf32> to vector<2x128xf32>
    %cst_20 = arith.constant dense<0.000000e+00> : vector<2x128xf32>
    %73 = tpu.matmul %71, %13, %cst_20 {dimension_numbers = #tpu.dot_dimension_numbers<[1], [0], [0], [1], [0, 0, 1, 1], [], []>} : vector<2x32xf32>, vector<32x128xf32>, vector<2x128xf32> -> vector<2x128xf32>
    %74 = arith.addf %72, %73 : vector<2x128xf32>
    %75 = vector.extract_strided_slice %74 {offsets = [0, 0], sizes = [2, 32], strides = [1, 1]} : vector<2x128xf32> to vector<2x32xf32>
    %76 = arith.negf %75 : vector<2x32xf32>
    %77 = math.exp %76 : vector<2x32xf32>
    %cst_21 = arith.constant 1.000000e+00 : f32
    %78 = vector.broadcast %cst_21 : f32 to vector<2x32xf32>
    %79 = arith.addf %78, %77 : vector<2x32xf32>
    %80 = arith.divf %78, %79 : vector<2x32xf32>
    %81 = vector.extract_strided_slice %74 {offsets = [0, 32], sizes = [2, 32], strides = [1, 1]} : vector<2x128xf32> to vector<2x32xf32>
    %82 = arith.negf %81 : vector<2x32xf32>
    %83 = math.exp %82 : vector<2x32xf32>
    %cst_22 = arith.constant 1.000000e+00 : f32
    %84 = vector.broadcast %cst_22 : f32 to vector<2x32xf32>
    %85 = arith.addf %84, %83 : vector<2x32xf32>
    %86 = arith.divf %84, %85 : vector<2x32xf32>
    %87 = vector.extract_strided_slice %74 {offsets = [0, 64], sizes = [2, 32], strides = [1, 1]} : vector<2x128xf32> to vector<2x32xf32>
    %88 = math.tanh %87 : vector<2x32xf32>
    %89 = vector.extract_strided_slice %74 {offsets = [0, 96], sizes = [2, 32], strides = [1, 1]} : vector<2x128xf32> to vector<2x32xf32>
    %90 = arith.negf %89 : vector<2x32xf32>
    %91 = math.exp %90 : vector<2x32xf32>
    %cst_23 = arith.constant 1.000000e+00 : f32
    %92 = vector.broadcast %cst_23 : f32 to vector<2x32xf32>
    %93 = arith.addf %92, %91 : vector<2x32xf32>
    %94 = arith.divf %92, %93 : vector<2x32xf32>
    %95 = arith.mulf %86, %69 : vector<2x32xf32>
    %96 = arith.mulf %80, %88 : vector<2x32xf32>
    %97 = arith.addf %95, %96 : vector<2x32xf32>
    %98 = math.tanh %97 : vector<2x32xf32>
    %99 = arith.mulf %94, %98 : vector<2x32xf32>
    %100 = vector.extract_strided_slice %12 {offsets = [6, 0], sizes = [2, 128], strides = [1, 1]} : vector<16x128xf32> to vector<2x128xf32>
    %cst_24 = arith.constant dense<0.000000e+00> : vector<2x128xf32>
    %101 = tpu.matmul %99, %13, %cst_24 {dimension_numbers = #tpu.dot_dimension_numbers<[1], [0], [0], [1], [0, 0, 1, 1], [], []>} : vector<2x32xf32>, vector<32x128xf32>, vector<2x128xf32> -> vector<2x128xf32>
    %102 = arith.addf %100, %101 : vector<2x128xf32>
    %103 = vector.extract_strided_slice %102 {offsets = [0, 0], sizes = [2, 32], strides = [1, 1]} : vector<2x128xf32> to vector<2x32xf32>
    %104 = arith.negf %103 : vector<2x32xf32>
    %105 = math.exp %104 : vector<2x32xf32>
    %cst_25 = arith.constant 1.000000e+00 : f32
    %106 = vector.broadcast %cst_25 : f32 to vector<2x32xf32>
    %107 = arith.addf %106, %105 : vector<2x32xf32>
    %108 = arith.divf %106, %107 : vector<2x32xf32>
    %109 = vector.extract_strided_slice %102 {offsets = [0, 32], sizes = [2, 32], strides = [1, 1]} : vector<2x128xf32> to vector<2x32xf32>
    %110 = arith.negf %109 : vector<2x32xf32>
    %111 = math.exp %110 : vector<2x32xf32>
    %cst_26 = arith.constant 1.000000e+00 : f32
    %112 = vector.broadcast %cst_26 : f32 to vector<2x32xf32>
    %113 = arith.addf %112, %111 : vector<2x32xf32>
    %114 = arith.divf %112, %113 : vector<2x32xf32>
    %115 = vector.extract_strided_slice %102 {offsets = [0, 64], sizes = [2, 32], strides = [1, 1]} : vector<2x128xf32> to vector<2x32xf32>
    %116 = math.tanh %115 : vector<2x32xf32>
    %117 = vector.extract_strided_slice %102 {offsets = [0, 96], sizes = [2, 32], strides = [1, 1]} : vector<2x128xf32> to vector<2x32xf32>
    %118 = arith.negf %117 : vector<2x32xf32>
    %119 = math.exp %118 : vector<2x32xf32>
    %cst_27 = arith.constant 1.000000e+00 : f32
    %120 = vector.broadcast %cst_27 : f32 to vector<2x32xf32>
    %121 = arith.addf %120, %119 : vector<2x32xf32>
    %122 = arith.divf %120, %121 : vector<2x32xf32>
    %123 = arith.mulf %114, %97 : vector<2x32xf32>
    %124 = arith.mulf %108, %116 : vector<2x32xf32>
    %125 = arith.addf %123, %124 : vector<2x32xf32>
    %126 = math.tanh %125 : vector<2x32xf32>
    %127 = arith.mulf %122, %126 : vector<2x32xf32>
    %128 = vector.extract_strided_slice %12 {offsets = [8, 0], sizes = [2, 128], strides = [1, 1]} : vector<16x128xf32> to vector<2x128xf32>
    %cst_28 = arith.constant dense<0.000000e+00> : vector<2x128xf32>
    %129 = tpu.matmul %127, %13, %cst_28 {dimension_numbers = #tpu.dot_dimension_numbers<[1], [0], [0], [1], [0, 0, 1, 1], [], []>} : vector<2x32xf32>, vector<32x128xf32>, vector<2x128xf32> -> vector<2x128xf32>
    %130 = arith.addf %128, %129 : vector<2x128xf32>
    %131 = vector.extract_strided_slice %130 {offsets = [0, 0], sizes = [2, 32], strides = [1, 1]} : vector<2x128xf32> to vector<2x32xf32>
    %132 = arith.negf %131 : vector<2x32xf32>
    %133 = math.exp %132 : vector<2x32xf32>
    %cst_29 = arith.constant 1.000000e+00 : f32
    %134 = vector.broadcast %cst_29 : f32 to vector<2x32xf32>
    %135 = arith.addf %134, %133 : vector<2x32xf32>
    %136 = arith.divf %134, %135 : vector<2x32xf32>
    %137 = vector.extract_strided_slice %130 {offsets = [0, 32], sizes = [2, 32], strides = [1, 1]} : vector<2x128xf32> to vector<2x32xf32>
    %138 = arith.negf %137 : vector<2x32xf32>
    %139 = math.exp %138 : vector<2x32xf32>
    %cst_30 = arith.constant 1.000000e+00 : f32
    %140 = vector.broadcast %cst_30 : f32 to vector<2x32xf32>
    %141 = arith.addf %140, %139 : vector<2x32xf32>
    %142 = arith.divf %140, %141 : vector<2x32xf32>
    %143 = vector.extract_strided_slice %130 {offsets = [0, 64], sizes = [2, 32], strides = [1, 1]} : vector<2x128xf32> to vector<2x32xf32>
    %144 = math.tanh %143 : vector<2x32xf32>
    %145 = vector.extract_strided_slice %130 {offsets = [0, 96], sizes = [2, 32], strides = [1, 1]} : vector<2x128xf32> to vector<2x32xf32>
    %146 = arith.negf %145 : vector<2x32xf32>
    %147 = math.exp %146 : vector<2x32xf32>
    %cst_31 = arith.constant 1.000000e+00 : f32
    %148 = vector.broadcast %cst_31 : f32 to vector<2x32xf32>
    %149 = arith.addf %148, %147 : vector<2x32xf32>
    %150 = arith.divf %148, %149 : vector<2x32xf32>
    %151 = arith.mulf %142, %125 : vector<2x32xf32>
    %152 = arith.mulf %136, %144 : vector<2x32xf32>
    %153 = arith.addf %151, %152 : vector<2x32xf32>
    %154 = math.tanh %153 : vector<2x32xf32>
    %155 = arith.mulf %150, %154 : vector<2x32xf32>
    %156 = vector.extract_strided_slice %12 {offsets = [10, 0], sizes = [2, 128], strides = [1, 1]} : vector<16x128xf32> to vector<2x128xf32>
    %cst_32 = arith.constant dense<0.000000e+00> : vector<2x128xf32>
    %157 = tpu.matmul %155, %13, %cst_32 {dimension_numbers = #tpu.dot_dimension_numbers<[1], [0], [0], [1], [0, 0, 1, 1], [], []>} : vector<2x32xf32>, vector<32x128xf32>, vector<2x128xf32> -> vector<2x128xf32>
    %158 = arith.addf %156, %157 : vector<2x128xf32>
    %159 = vector.extract_strided_slice %158 {offsets = [0, 0], sizes = [2, 32], strides = [1, 1]} : vector<2x128xf32> to vector<2x32xf32>
    %160 = arith.negf %159 : vector<2x32xf32>
    %161 = math.exp %160 : vector<2x32xf32>
    %cst_33 = arith.constant 1.000000e+00 : f32
    %162 = vector.broadcast %cst_33 : f32 to vector<2x32xf32>
    %163 = arith.addf %162, %161 : vector<2x32xf32>
    %164 = arith.divf %162, %163 : vector<2x32xf32>
    %165 = vector.extract_strided_slice %158 {offsets = [0, 32], sizes = [2, 32], strides = [1, 1]} : vector<2x128xf32> to vector<2x32xf32>
    %166 = arith.negf %165 : vector<2x32xf32>
    %167 = math.exp %166 : vector<2x32xf32>
    %cst_34 = arith.constant 1.000000e+00 : f32
    %168 = vector.broadcast %cst_34 : f32 to vector<2x32xf32>
    %169 = arith.addf %168, %167 : vector<2x32xf32>
    %170 = arith.divf %168, %169 : vector<2x32xf32>
    %171 = vector.extract_strided_slice %158 {offsets = [0, 64], sizes = [2, 32], strides = [1, 1]} : vector<2x128xf32> to vector<2x32xf32>
    %172 = math.tanh %171 : vector<2x32xf32>
    %173 = vector.extract_strided_slice %158 {offsets = [0, 96], sizes = [2, 32], strides = [1, 1]} : vector<2x128xf32> to vector<2x32xf32>
    %174 = arith.negf %173 : vector<2x32xf32>
    %175 = math.exp %174 : vector<2x32xf32>
    %cst_35 = arith.constant 1.000000e+00 : f32
    %176 = vector.broadcast %cst_35 : f32 to vector<2x32xf32>
    %177 = arith.addf %176, %175 : vector<2x32xf32>
    %178 = arith.divf %176, %177 : vector<2x32xf32>
    %179 = arith.mulf %170, %153 : vector<2x32xf32>
    %180 = arith.mulf %164, %172 : vector<2x32xf32>
    %181 = arith.addf %179, %180 : vector<2x32xf32>
    %182 = math.tanh %181 : vector<2x32xf32>
    %183 = arith.mulf %178, %182 : vector<2x32xf32>
    %184 = vector.extract_strided_slice %12 {offsets = [12, 0], sizes = [2, 128], strides = [1, 1]} : vector<16x128xf32> to vector<2x128xf32>
    %cst_36 = arith.constant dense<0.000000e+00> : vector<2x128xf32>
    %185 = tpu.matmul %183, %13, %cst_36 {dimension_numbers = #tpu.dot_dimension_numbers<[1], [0], [0], [1], [0, 0, 1, 1], [], []>} : vector<2x32xf32>, vector<32x128xf32>, vector<2x128xf32> -> vector<2x128xf32>
    %186 = arith.addf %184, %185 : vector<2x128xf32>
    %187 = vector.extract_strided_slice %186 {offsets = [0, 0], sizes = [2, 32], strides = [1, 1]} : vector<2x128xf32> to vector<2x32xf32>
    %188 = arith.negf %187 : vector<2x32xf32>
    %189 = math.exp %188 : vector<2x32xf32>
    %cst_37 = arith.constant 1.000000e+00 : f32
    %190 = vector.broadcast %cst_37 : f32 to vector<2x32xf32>
    %191 = arith.addf %190, %189 : vector<2x32xf32>
    %192 = arith.divf %190, %191 : vector<2x32xf32>
    %193 = vector.extract_strided_slice %186 {offsets = [0, 32], sizes = [2, 32], strides = [1, 1]} : vector<2x128xf32> to vector<2x32xf32>
    %194 = arith.negf %193 : vector<2x32xf32>
    %195 = math.exp %194 : vector<2x32xf32>
    %cst_38 = arith.constant 1.000000e+00 : f32
    %196 = vector.broadcast %cst_38 : f32 to vector<2x32xf32>
    %197 = arith.addf %196, %195 : vector<2x32xf32>
    %198 = arith.divf %196, %197 : vector<2x32xf32>
    %199 = vector.extract_strided_slice %186 {offsets = [0, 64], sizes = [2, 32], strides = [1, 1]} : vector<2x128xf32> to vector<2x32xf32>
    %200 = math.tanh %199 : vector<2x32xf32>
    %201 = vector.extract_strided_slice %186 {offsets = [0, 96], sizes = [2, 32], strides = [1, 1]} : vector<2x128xf32> to vector<2x32xf32>
    %202 = arith.negf %201 : vector<2x32xf32>
    %203 = math.exp %202 : vector<2x32xf32>
    %cst_39 = arith.constant 1.000000e+00 : f32
    %204 = vector.broadcast %cst_39 : f32 to vector<2x32xf32>
    %205 = arith.addf %204, %203 : vector<2x32xf32>
    %206 = arith.divf %204, %205 : vector<2x32xf32>
    %207 = arith.mulf %198, %181 : vector<2x32xf32>
    %208 = arith.mulf %192, %200 : vector<2x32xf32>
    %209 = arith.addf %207, %208 : vector<2x32xf32>
    %210 = math.tanh %209 : vector<2x32xf32>
    %211 = arith.mulf %206, %210 : vector<2x32xf32>
    %212 = vector.extract_strided_slice %12 {offsets = [14, 0], sizes = [2, 128], strides = [1, 1]} : vector<16x128xf32> to vector<2x128xf32>
    %cst_40 = arith.constant dense<0.000000e+00> : vector<2x128xf32>
    %213 = tpu.matmul %211, %13, %cst_40 {dimension_numbers = #tpu.dot_dimension_numbers<[1], [0], [0], [1], [0, 0, 1, 1], [], []>} : vector<2x32xf32>, vector<32x128xf32>, vector<2x128xf32> -> vector<2x128xf32>
    %214 = arith.addf %212, %213 : vector<2x128xf32>
    %215 = vector.extract_strided_slice %214 {offsets = [0, 0], sizes = [2, 32], strides = [1, 1]} : vector<2x128xf32> to vector<2x32xf32>
    %216 = arith.negf %215 : vector<2x32xf32>
    %217 = math.exp %216 : vector<2x32xf32>
    %cst_41 = arith.constant 1.000000e+00 : f32
    %218 = vector.broadcast %cst_41 : f32 to vector<2x32xf32>
    %219 = arith.addf %218, %217 : vector<2x32xf32>
    %220 = arith.divf %218, %219 : vector<2x32xf32>
    %221 = vector.extract_strided_slice %214 {offsets = [0, 32], sizes = [2, 32], strides = [1, 1]} : vector<2x128xf32> to vector<2x32xf32>
    %222 = arith.negf %221 : vector<2x32xf32>
    %223 = math.exp %222 : vector<2x32xf32>
    %cst_42 = arith.constant 1.000000e+00 : f32
    %224 = vector.broadcast %cst_42 : f32 to vector<2x32xf32>
    %225 = arith.addf %224, %223 : vector<2x32xf32>
    %226 = arith.divf %224, %225 : vector<2x32xf32>
    %227 = vector.extract_strided_slice %214 {offsets = [0, 64], sizes = [2, 32], strides = [1, 1]} : vector<2x128xf32> to vector<2x32xf32>
    %228 = math.tanh %227 : vector<2x32xf32>
    %229 = vector.extract_strided_slice %214 {offsets = [0, 96], sizes = [2, 32], strides = [1, 1]} : vector<2x128xf32> to vector<2x32xf32>
    %230 = arith.negf %229 : vector<2x32xf32>
    %231 = math.exp %230 : vector<2x32xf32>
    %cst_43 = arith.constant 1.000000e+00 : f32
    %232 = vector.broadcast %cst_43 : f32 to vector<2x32xf32>
    %233 = arith.addf %232, %231 : vector<2x32xf32>
    %234 = arith.divf %232, %233 : vector<2x32xf32>
    %235 = arith.mulf %226, %209 : vector<2x32xf32>
    %236 = arith.mulf %220, %228 : vector<2x32xf32>
    %237 = arith.addf %235, %236 : vector<2x32xf32>
    %238 = math.tanh %237 : vector<2x32xf32>
    %239 = arith.mulf %234, %238 : vector<2x32xf32>
    %c0_44 = arith.constant 0 : index
    %c0_45 = arith.constant 0 : index
    %240 = vector.load %arg5[%c0_44, %c0_45] : memref<2x32xf32, #tpu.memory_space<vmem>>, vector<2x32xf32>
    tpu.vector_store %arg5[%c0_44, %c0_45], %239 {strides = array<i32>} : memref<2x32xf32, #tpu.memory_space<vmem>>, vector<2x32xf32>,
    return
  }
}

</mosaic_0001>

<llo_original>
// kernel: tpu_custom_call.1
$region0: #{tpu_custom_call.1}
  #allocation0 [shape = 'u32[]', space=smem, size = 0x4, offset = 0x4, fixed_abs, tag = 'smem constant byte address 0x4 - core index']
  #allocation1 [shape = 'u32[144,128]{1,0:T(1,128)}', space=vmem, size = 0x12000, scoped, tag = 'internal scratch']
  %s0 = inlined_call_operand.vmem [shape: s32[16,1], index: 0, kind: input, shape index: {}]
  %s1 = inlined_call_operand.vmem [shape: f32[32,16], index: 1, kind: input, shape index: {}]
  %s2 = inlined_call_operand.vmem [shape: f32[16,128], index: 2, kind: input, shape index: {}]
  %s3 = inlined_call_operand.vmem [shape: f32[32,128], index: 3, kind: input, shape index: {}]
  %s4 = inlined_call_operand.vmem [shape: f32[1,128], index: 4, kind: input, shape index: {}]
  %s5 = inlined_call_operand.hbm [shape: f32[2,32], index: 5, kind: output, shape index: {}]
  %s6 = sld [smem:[#allocation0]]
  $region30: #{tpu_custom_call.1} parent=0
    _
  %s8 = ssub.s32 1, %s6
  %s9 = scalar_select 0, %s8, %s6
  $region1: #{tpu_custom_call.1} parent=0
    #allocation2 [shape = 'u8[1024]{0}', space=vmem, size = 0x400, scoped, tag = 'output window, operand 0, single buffered']
    #allocation3 [shape = 's32[1]{0}', space=sflag, size = 0x4, scoped, tag = 'scoped memory for tpu_custom_call.1']
    %10 = vsyncpa [#allocation3], 0
    // Predicated region
    $region2: #{tpu_custom_call.1} parent=1 // pred_check
      _
    $region3: #{tpu_custom_call.1} parent=1 // pred_check_branch
      %12 = sbr.rel (0) target = $region5
    $region4: #{tpu_custom_call.1} parent=1 // pred_region
      _
    $region5: #{tpu_custom_call.1} parent=1 // pred_fallthru
      _
    // Predicated region
    $region6: #{tpu_custom_call.1} parent=1 // pred_check
      _
    $region7: #{tpu_custom_call.1} parent=1 // pred_check_branch
      %14 = sbr.rel (0) target = $region9
    $region8: #{tpu_custom_call.1} parent=1 // pred_region
      _
    $region9: #{tpu_custom_call.1} parent=1 // pred_fallthru
      _
    // Predicated region
    $region10: #{tpu_custom_call.1} parent=1 // pred_check
      _
    $region11: #{tpu_custom_call.1} parent=1 // pred_check_branch
      %16 = sbr.rel (0) target = $region13
    $region12: #{tpu_custom_call.1} parent=1 // pred_region
      _
    $region13: #{tpu_custom_call.1} parent=1 // pred_fallthru
      _
    // Predicated region
    $region14: #{tpu_custom_call.1} parent=1 // pred_check
      _
    $region15: #{tpu_custom_call.1} parent=1 // pred_check_branch
      %18 = sbr.rel (0) target = $region17
    $region16: #{tpu_custom_call.1} parent=1 // pred_region
      _
    $region17: #{tpu_custom_call.1} parent=1 // pred_fallthru
      _
    // Predicated region
    $region18: #{tpu_custom_call.1} parent=1 // pred_check
      _
    $region19: #{tpu_custom_call.1} parent=1 // pred_check_branch
      %20 = sbr.rel (0) target = $region21
    $region20: #{tpu_custom_call.1} parent=1 // pred_region
      _
    $region21: #{tpu_custom_call.1} parent=1 // pred_fallthru
      _
    %v21 = vld [vmem:[%s0] sm:$0xff]
    %v22 = vld [vmem:[%s0 + $0x8] sm:$0xff]
    %v23 = vlaneseq
    %v24 = vand.u32 %v23, 127
    %25 = vset.pattern.permute.xlu0 0
    %26 = vperm.xlu0 %25, %v21
    %v27 = vpop.permute.xlu0 %26
    %28 = vset.pattern.permute.xlu0 0
    %29 = vperm.xlu0 %28, %v22
    %v30 = vpop.permute.xlu0 %29
    %vm31 = vcmp.eq.s32.totalorder %v27, %v24
    %vm32 = vcmp.eq.s32.totalorder %v30, %v24
    %v33 = vsel %vm31, 1, 0
    %v34 = vsel %vm32, 1, 0
    %v35 = vcvt.s32.f32 %v33
    %v36 = vcvt.s32.f32 %v34
    %v37 = vld [vmem:[%s1] sm:$0xff]
    %v38 = vld [vmem:[%s1 + $0x8] sm:$0xff]
    %v39 = vld [vmem:[%s1 + $0x10] sm:$0xff]
    %v40 = vld [vmem:[%s1 + $0x18] sm:$0xff]
    %vm41 = vcmask 261120
    %v43 = vsel %vm41, %v35, 0
    %v46 = vsel %vm41, %v36, 0
    %48 = vmatprep.subr.mxu0 0.0
    %49 = vmatpush1.msra.mxu0 %v37
    %50 = vmatprep.subr.mxu0 0.0
    %51 = vmatpush1.msra.mxu0 %v38
    %52 = vmatprep.subr.mxu0 0.0
    %53 = vmatpush1.msra.mxu0 %v39
    %54 = vmatprep.subr.mxu0 0.0
    %55 = vmatpush1.msra.mxu0 %v40
    %56 = vmatprep.subr.mxu0 0.0
    %57 = vmatpush1.msra.mxu0 0.0
    %58 = vmatprep.subr.mxu0 0.0
    %59 = vmatpush1.msra.mxu0 0.0
    %60 = vmatprep.subr.mxu0 0.0
    %61 = vmatpush1.msra.mxu0 0.0
    %62 = vmatprep.subr.mxu0 0.0
    %63 = vmatpush1.msra.mxu0 0.0
    %64 = vmatprep.subr.mxu0 0.0
    %65 = vmatpush1.msra.mxu0 0.0
    %66 = vmatprep.subr.mxu0 0.0
    %67 = vmatpush1.msra.mxu0 0.0
    %68 = vmatprep.subr.mxu0 0.0
    %69 = vmatpush1.msra.mxu0 0.0
    %70 = vmatprep.subr.mxu0 0.0
    %71 = vmatpush1.msra.mxu0 0.0
    %72 = vmatprep.subr.mxu0 0.0
    %73 = vmatpush1.msra.mxu0 0.0
    %74 = vmatprep.subr.mxu0 0.0
    %75 = vmatpush1.msra.mxu0 0.0
    %76 = vmatprep.subr.mxu0 0.0
    %77 = vmatpush1.msra.mxu0 0.0
    %78 = vmatprep.subr.mxu0 0.0
    %79 = vmatpush1.msra.mxu0 0.0
    %80 = vmatprep.subr.mxu0 0.0
    %81 = vmatpush1.msra.mxu0 0.0
    %82 = vmatprep.subr.mxu0 0.0
    %83 = vmatpush1.msra.mxu0 0.0
    %84 = vmatprep.subr.mxu0 0.0
    %85 = vmatpush1.msra.mxu0 0.0
    %86 = vmatprep.subr.mxu0 0.0
    %87 = vmatpush1.msra.mxu0 0.0
    %88 = vmatprep.subr.mxu0 0.0
    %89 = vmatpush1.msra.mxu0 0.0
    %90 = vmatprep.subr.mxu0 0.0
    %91 = vmatpush1.msra.mxu0 0.0
    %92 = vmatprep.subr.mxu0 0.0
    %93 = vmatpush1.msra.mxu0 0.0
    %94 = vmatprep.subr.mxu0 0.0
    %95 = vmatpush1.msra.mxu0 0.0
    %96 = vmatprep.subr.mxu0 0.0
    %97 = vmatpush1.msra.mxu0 0.0
    %98 = vmatprep.subr.mxu0 0.0
    %99 = vmatpush1.msra.mxu0 0.0
    %100 = vmatprep.subr.mxu0 0.0
    %101 = vmatpush1.msra.mxu0 0.0
    %102 = vmatprep.subr.mxu0 0.0
    %103 = vmatpush1.msra.mxu0 0.0
    %104 = vmatprep.subr.mxu0 0.0
    %105 = vmatpush1.msra.mxu0 0.0
    %106 = vmatprep.subr.mxu0 0.0
    %107 = vmatpush1.msra.mxu0 0.0
    %108 = vmatprep.subr.mxu0 0.0
    %109 = vmatpush1.msra.mxu0 0.0
    %110 = vmatprep.subr.mxu0 0.0
    %111 = vmatpush1.msra.mxu0 0.0
    %112 = vmatprep.mubr.f32.mxu0 0.0
    %113 = vmatmul.mubr.f32.gmra.mrb[0].mxu0 %v43
    %v114 = vpop.f32.mrb[0].mxu0
    %v115 = vadd.f32 0.0, %v114
    %v116 = vpop.f32.mrb[0].mxu0
    %117 = vmatprep.mubr.f32.mxu0 0.0
    %118 = vmatmul.mubr.f32.gmra.mrb[0].mxu0 %v46
    %v119 = vpop.f32.mrb[0].mxu0
    %v120 = vadd.f32 0.0, %v119
    %v121 = vpop.f32.mrb[0].mxu0
    %122 = vdwg.mxu0
    %v123 = vld [vmem:[%s2] sm:$0xff]
    %v124 = vld [vmem:[%s2 + $0x8] sm:$0xff]
    %v125 = vld [vmem:[%s4] sm:$0x1]
    %v127 = vlaneseq
    %v128 = vshrl.u32 %v127, 7
    %v129 = vsub.s32 0, %v128
    %v130 = vrot.slane %v125, %v129
    %vm132 = vcmask 130048
    %v134 = vsel %vm132, %v115, 0
    %v137 = vsel %vm132, %v120, 0
    %139 = vmatprep.subr.mxu0 0.0
    %140 = vmatpush1.msra.mxu0 %v123
    %141 = vmatprep.subr.mxu0 0.0
    %142 = vmatpush1.msra.mxu0 %v124
    %143 = vmatprep.subr.mxu0 0.0
    %144 = vmatpush1.msra.mxu0 0.0
    %145 = vmatprep.subr.mxu0 0.0
    %146 = vmatpush1.msra.mxu0 0.0
    %147 = vmatprep.subr.mxu0 0.0
    %148 = vmatpush1.msra.mxu0 0.0
    %149 = vmatprep.subr.mxu0 0.0
    %150 = vmatpush1.msra.mxu0 0.0
    %151 = vmatprep.subr.mxu0 0.0
    %152 = vmatpush1.msra.mxu0 0.0
    %153 = vmatprep.subr.mxu0 0.0
    %154 = vmatpush1.msra.mxu0 0.0
    %155 = vmatprep.subr.mxu0 0.0
    %156 = vmatpush1.msra.mxu0 0.0
    %157 = vmatprep.subr.mxu0 0.0
    %158 = vmatpush1.msra.mxu0 0.0
    %159 = vmatprep.subr.mxu0 0.0
    %160 = vmatpush1.msra.mxu0 0.0
    %161 = vmatprep.subr.mxu0 0.0
    %162 = vmatpush1.msra.mxu0 0.0
    %163 = vmatprep.subr.mxu0 0.0
    %164 = vmatpush1.msra.mxu0 0.0
    %165 = vmatprep.subr.mxu0 0.0
    %166 = vmatpush1.msra.mxu0 0.0
    %167 = vmatprep.subr.mxu0 0.0
    %168 = vmatpush1.msra.mxu0 0.0
    %169 = vmatprep.subr.mxu0 0.0
    %170 = vmatpush1.msra.mxu0 0.0
    %171 = vmatprep.subr.mxu0 0.0
    %172 = vmatpush1.msra.mxu0 0.0
    %173 = vmatprep.subr.mxu0 0.0
    %174 = vmatpush1.msra.mxu0 0.0
    %175 = vmatprep.subr.mxu0 0.0
    %176 = vmatpush1.msra.mxu0 0.0
    %177 = vmatprep.subr.mxu0 0.0
    %178 = vmatpush1.msra.mxu0 0.0
    %179 = vmatprep.subr.mxu0 0.0
    %180 = vmatpush1.msra.mxu0 0.0
    %181 = vmatprep.subr.mxu0 0.0
    %182 = vmatpush1.msra.mxu0 0.0
    %183 = vmatprep.subr.mxu0 0.0
    %184 = vmatpush1.msra.mxu0 0.0
    %185 = vmatprep.subr.mxu0 0.0
    %186 = vmatpush1.msra.mxu0 0.0
    %187 = vmatprep.subr.mxu0 0.0
    %188 = vmatpush1.msra.mxu0 0.0
    %189 = vmatprep.subr.mxu0 0.0
    %190 = vmatpush1.msra.mxu0 0.0
    %191 = vmatprep.subr.mxu0 0.0
    %192 = vmatpush1.msra.mxu0 0.0
    %193 = vmatprep.subr.mxu0 0.0
    %194 = vmatpush1.msra.mxu0 0.0
    %195 = vmatprep.subr.mxu0 0.0
    %196 = vmatpush1.msra.mxu0 0.0
    %197 = vmatprep.subr.mxu0 0.0
    %198 = vmatpush1.msra.mxu0 0.0
    %199 = vmatprep.subr.mxu0 0.0
    %200 = vmatpush1.msra.mxu0 0.0
    %201 = vmatprep.subr.mxu0 0.0
    %202 = vmatpush1.msra.mxu0 0.0
    %203 = vmatprep.mubr.f32.mxu0 0.0
    %204 = vmatmul.mubr.f32.gmra.mrb[0].mxu0 %v134
    %v205 = vpop.f32.mrb[0].mxu0
    %v206 = vadd.f32 %v130, %v205
    %v207 = vpop.f32.mrb[0].mxu0
    %208 = vmatprep.mubr.f32.mxu0 0.0
    %209 = vmatmul.mubr.f32.gmra.mrb[0].mxu0 %v137
    %v210 = vpop.f32.mrb[0].mxu0
    %v211 = vadd.f32 %v130, %v210
    %v212 = vpop.f32.mrb[0].mxu0
    %213 = vdwg.mxu0
    %v214 = vld [vmem:[%s3] sm:$0xff]
    %v215 = vld [vmem:[%s3 + $0x8] sm:$0xff]
    %v216 = vld [vmem:[%s3 + $0x10] sm:$0xff]
    %v217 = vld [vmem:[%s3 + $0x18] sm:$0xff]
    %v219 = vsel %vm41, 0.0, 0
    %221 = vmatprep.subr.mxu0 0.0
    %222 = vmatpush1.msra.mxu0 %v214
    %223 = vmatprep.subr.mxu0 0.0
    %224 = vmatpush1.msra.mxu0 %v215
    %225 = vmatprep.subr.mxu0 0.0
    %226 = vmatpush1.msra.mxu0 %v216
    %227 = vmatprep.subr.mxu0 0.0
    %228 = vmatpush1.msra.mxu0 %v217
    %229 = vmatprep.subr.mxu0 0.0
    %230 = vmatpush1.msra.mxu0 0.0
    %231 = vmatprep.subr.mxu0 0.0
    %232 = vmatpush1.msra.mxu0 0.0
    %233 = vmatprep.subr.mxu0 0.0
    %234 = vmatpush1.msra.mxu0 0.0
    %235 = vmatprep.subr.mxu0 0.0
    %236 = vmatpush1.msra.mxu0 0.0
    %237 = vmatprep.subr.mxu0 0.0
    %238 = vmatpush1.msra.mxu0 0.0
    %239 = vmatprep.subr.mxu0 0.0
    %240 = vmatpush1.msra.mxu0 0.0
    %241 = vmatprep.subr.mxu0 0.0
    %242 = vmatpush1.msra.mxu0 0.0
    %243 = vmatprep.subr.mxu0 0.0
    %244 = vmatpush1.msra.mxu0 0.0
    %245 = vmatprep.subr.mxu0 0.0
    %246 = vmatpush1.msra.mxu0 0.0
    %247 = vmatprep.subr.mxu0 0.0
    %248 = vmatpush1.msra.mxu0 0.0
    %249 = vmatprep.subr.mxu0 0.0
    %250 = vmatpush1.msra.mxu0 0.0
    %251 = vmatprep.subr.mxu0 0.0
    %252 = vmatpush1.msra.mxu0 0.0
    %253 = vmatprep.subr.mxu0 0.0
    %254 = vmatpush1.msra.mxu0 0.0
    %255 = vmatprep.subr.mxu0 0.0
    %256 = vmatpush1.msra.mxu0 0.0
    %257 = vmatprep.subr.mxu0 0.0
    %258 = vmatpush1.msra.mxu0 0.0
    %259 = vmatprep.subr.mxu0 0.0
    %260 = vmatpush1.msra.mxu0 0.0
    %261 = vmatprep.subr.mxu0 0.0
    %262 = vmatpush1.msra.mxu0 0.0
    %263 = vmatprep.subr.mxu0 0.0
    %264 = vmatpush1.msra.mxu0 0.0
    %265 = vmatprep.subr.mxu0 0.0
    %266 = vmatpush1.msra.mxu0 0.0
    %267 = vmatprep.subr.mxu0 0.0
    %268 = vmatpush1.msra.mxu0 0.0
    %269 = vmatprep.subr.mxu0 0.0
    %270 = vmatpush1.msra.mxu0 0.0
    %271 = vmatprep.subr.mxu0 0.0
    %272 = vmatpush1.msra.mxu0 0.0
    %273 = vmatprep.subr.mxu0 0.0
    %274 = vmatpush1.msra.mxu0 0.0
    %275 = vmatprep.subr.mxu0 0.0
    %276 = vmatpush1.msra.mxu0 0.0
    %277 = vmatprep.subr.mxu0 0.0
    %278 = vmatpush1.msra.mxu0 0.0
    %279 = vmatprep.subr.mxu0 0.0
    %280 = vmatpush1.msra.mxu0 0.0
    %281 = vmatprep.subr.mxu0 0.0
    %282 = vmatpush1.msra.mxu0 0.0
    %283 = vmatprep.subr.mxu0 0.0
    %284 = vmatpush1.msra.mxu0 0.0
    %285 = vmatprep.mubr.f32.mxu0 0.0
    %286 = vmatmul.mubr.f32.gmra.mrb[0].mxu0 %v219
    %v287 = vpop.f32.mrb[0].mxu0
    %v288 = vadd.f32 0.0, %v287
    %v289 = vpop.f32.mrb[0].mxu0
    %290 = vdwg.mxu0
    %v291 = vadd.f32 %v206, %v288
    %v292 = vxor.u32 %v291, 2147483648
    %v293 = vmul.f32 %v292, 1.442695
    %v294 = vpow.pop %v293
    %v295 = vadd.f32 %v294, 1.0
    %v296 = vrcp.pop %v295
    %v297 = vmul.f32 1.0, %v296
    %v298 = vtanh.pop %v291
    %v299 = vmul.f32 %v297, 0.0
    %301 = vrot.lane.b32.xlu0 %v298, 64
    %v302 = vpop.permute.xlu0 %301
    %v304 = vmul.f32 %v297, %v302
    %306 = vrot.lane.b32.xlu0 %v304, 32
    %v307 = vpop.permute.xlu0 %306
    %v309 = vadd.f32 %v299, %v307
    %v310 = vtanh.pop %v309
    %312 = vrot.lane.b32.xlu0 %v310, 64
    %v313 = vpop.permute.xlu0 %312
    %v315 = vmul.f32 %v297, %v313
    %317 = vrot.lane.b32.xlu0 %v315, 32
    %v318 = vpop.permute.xlu0 %317
    %v319 = vsel %vm41, %v318, 0
    %321 = vmatprep.subr.mxu0 0.0
    %322 = vmatpush1.msra.mxu0 %v214
    %323 = vmatprep.subr.mxu0 0.0
    %324 = vmatpush1.msra.mxu0 %v215
    %325 = vmatprep.subr.mxu0 0.0
    %326 = vmatpush1.msra.mxu0 %v216
    %327 = vmatprep.subr.mxu0 0.0
    %328 = vmatpush1.msra.mxu0 %v217
    %329 = vmatprep.subr.mxu0 0.0
    %330 = vmatpush1.msra.mxu0 0.0
    %331 = vmatprep.subr.mxu0 0.0
    %332 = vmatpush1.msra.mxu0 0.0
    %333 = vmatprep.subr.mxu0 0.0
    %334 = vmatpush1.msra.mxu0 0.0
    %335 = vmatprep.subr.mxu0 0.0
    %336 = vmatpush1.msra.mxu0 0.0
    %337 = vmatprep.subr.mxu0 0.0
    %338 = vmatpush1.msra.mxu0 0.0
    %339 = vmatprep.subr.mxu0 0.0
    %340 = vmatpush1.msra.mxu0 0.0
    %341 = vmatprep.subr.mxu0 0.0
    %342 = vmatpush1.msra.mxu0 0.0
    %343 = vmatprep.subr.mxu0 0.0
    %344 = vmatpush1.msra.mxu0 0.0
    %345 = vmatprep.subr.mxu0 0.0
    %346 = vmatpush1.msra.mxu0 0.0
    %347 = vmatprep.subr.mxu0 0.0
    %348 = vmatpush1.msra.mxu0 0.0
    %349 = vmatprep.subr.mxu0 0.0
    %350 = vmatpush1.msra.mxu0 0.0
    %351 = vmatprep.subr.mxu0 0.0
    %352 = vmatpush1.msra.mxu0 0.0
    %353 = vmatprep.subr.mxu0 0.0
    %354 = vmatpush1.msra.mxu0 0.0
    %355 = vmatprep.subr.mxu0 0.0
    %356 = vmatpush1.msra.mxu0 0.0
    %357 = vmatprep.subr.mxu0 0.0
    %358 = vmatpush1.msra.mxu0 0.0
    %359 = vmatprep.subr.mxu0 0.0
    %360 = vmatpush1.msra.mxu0 0.0
    %361 = vmatprep.subr.mxu0 0.0
    %362 = vmatpush1.msra.mxu0 0.0
    %363 = vmatprep.subr.mxu0 0.0
    %364 = vmatpush1.msra.mxu0 0.0
    %365 = vmatprep.subr.mxu0 0.0
    %366 = vmatpush1.msra.mxu0 0.0
    %367 = vmatprep.subr.mxu0 0.0
    %368 = vmatpush1.msra.mxu0 0.0
    %369 = vmatprep.subr.mxu0 0.0
    %370 = vmatpush1.msra.mxu0 0.0
    %371 = vmatprep.subr.mxu0 0.0
    %372 = vmatpush1.msra.mxu0 0.0
    %373 = vmatprep.subr.mxu0 0.0
    %374 = vmatpush1.msra.mxu0 0.0
    %375 = vmatprep.subr.mxu0 0.0
    %376 = vmatpush1.msra.mxu0 0.0
    %377 = vmatprep.subr.mxu0 0.0
    %378 = vmatpush1.msra.mxu0 0.0
    %379 = vmatprep.subr.mxu0 0.0
    %380 = vmatpush1.msra.mxu0 0.0
    %381 = vmatprep.subr.mxu0 0.0
    %382 = vmatpush1.msra.mxu0 0.0
    %383 = vmatprep.subr.mxu0 0.0
    %384 = vmatpush1.msra.mxu0 0.0
    %385 = vmatprep.mubr.f32.mxu0 0.0
    %386 = vmatmul.mubr.f32.gmra.mrb[0].mxu0 %v319
    %v387 = vpop.f32.mrb[0].mxu0
    %v388 = vadd.f32 0.0, %v387
    %v389 = vpop.f32.mrb[0].mxu0
    %390 = vdwg.mxu0
    %v392 = vrot.slane %v388, 6
    %v394 = vadd.f32 %v206, %v392
    %v395 = vxor.u32 %v394, 2147483648
    %v396 = vmul.f32 %v395, 1.442695
    %v397 = vpow.pop %v396
    %v398 = vadd.f32 %v397, 1.0
    %v399 = vrcp.pop %v398
    %v400 = vmul.f32 1.0, %v399
    %v401 = vtanh.pop %v394
    %v403 = vrot.slane %v309, 6
    %v405 = vmul.f32 %v400, %v403
    %407 = vrot.lane.b32.xlu0 %v401, 64
    %v408 = vpop.permute.xlu0 %407
    %v410 = vmul.f32 %v400, %v408
    %412 = vrot.lane.b32.xlu0 %v410, 32
    %v413 = vpop.permute.xlu0 %412
    %v415 = vadd.f32 %v405, %v413
    %v416 = vtanh.pop %v415
    %418 = vrot.lane.b32.xlu0 %v416, 64
    %v419 = vpop.permute.xlu0 %418
    %v421 = vmul.f32 %v400, %v419
    %v423 = vrot.slane %v421, 2
    %424 = vrot.lane.b32.xlu0 %v423, 32
    %v425 = vpop.permute.xlu0 %424
    %v426 = vsel %vm41, %v425, 0
    %428 = vmatprep.subr.mxu0 0.0
    %429 = vmatpush1.msra.mxu0 %v214
    %430 = vmatprep.subr.mxu0 0.0
    %431 = vmatpush1.msra.mxu0 %v215
    %432 = vmatprep.subr.mxu0 0.0
    %433 = vmatpush1.msra.mxu0 %v216
    %434 = vmatprep.subr.mxu0 0.0
    %435 = vmatpush1.msra.mxu0 %v217
    %436 = vmatprep.subr.mxu0 0.0
    %437 = vmatpush1.msra.mxu0 0.0
    %438 = vmatprep.subr.mxu0 0.0
    %439 = vmatpush1.msra.mxu0 0.0
    %440 = vmatprep.subr.mxu0 0.0
    %441 = vmatpush1.msra.mxu0 0.0
    %442 = vmatprep.subr.mxu0 0.0
    %443 = vmatpush1.msra.mxu0 0.0
    %444 = vmatprep.subr.mxu0 0.0
    %445 = vmatpush1.msra.mxu0 0.0
    %446 = vmatprep.subr.mxu0 0.0
    %447 = vmatpush1.msra.mxu0 0.0
    %448 = vmatprep.subr.mxu0 0.0
    %449 = vmatpush1.msra.mxu0 0.0
    %450 = vmatprep.subr.mxu0 0.0
    %451 = vmatpush1.msra.mxu0 0.0
    %452 = vmatprep.subr.mxu0 0.0
    %453 = vmatpush1.msra.mxu0 0.0
    %454 = vmatprep.subr.mxu0 0.0
    %455 = vmatpush1.msra.mxu0 0.0
    %456 = vmatprep.subr.mxu0 0.0
    %457 = vmatpush1.msra.mxu0 0.0
    %458 = vmatprep.subr.mxu0 0.0
    %459 = vmatpush1.msra.mxu0 0.0
    %460 = vmatprep.subr.mxu0 0.0
    %461 = vmatpush1.msra.mxu0 0.0
    %462 = vmatprep.subr.mxu0 0.0
    %463 = vmatpush1.msra.mxu0 0.0
    %464 = vmatprep.subr.mxu0 0.0
    %465 = vmatpush1.msra.mxu0 0.0
    %466 = vmatprep.subr.mxu0 0.0
    %467 = vmatpush1.msra.mxu0 0.0
    %468 = vmatprep.subr.mxu0 0.0
    %469 = vmatpush1.msra.mxu0 0.0
    %470 = vmatprep.subr.mxu0 0.0
    %471 = vmatpush1.msra.mxu0 0.0
    %472 = vmatprep.subr.mxu0 0.0
    %473 = vmatpush1.msra.mxu0 0.0
    %474 = vmatprep.subr.mxu0 0.0
    %475 = vmatpush1.msra.mxu0 0.0
    %476 = vmatprep.subr.mxu0 0.0
    %477 = vmatpush1.msra.mxu0 0.0
    %478 = vmatprep.subr.mxu0 0.0
    %479 = vmatpush1.msra.mxu0 0.0
    %480 = vmatprep.subr.mxu0 0.0
    %481 = vmatpush1.msra.mxu0 0.0
    %482 = vmatprep.subr.mxu0 0.0
    %483 = vmatpush1.msra.mxu0 0.0
    %484 = vmatprep.subr.mxu0 0.0
    %485 = vmatpush1.msra.mxu0 0.0
    %486 = vmatprep.subr.mxu0 0.0
    %487 = vmatpush1.msra.mxu0 0.0
    %488 = vmatprep.subr.mxu0 0.0
    %489 = vmatpush1.msra.mxu0 0.0
    %490 = vmatprep.subr.mxu0 0.0
    %491 = vmatpush1.msra.mxu0 0.0
    %492 = vmatprep.mubr.f32.mxu0 0.0
    %493 = vmatmul.mubr.f32.gmra.mrb[0].mxu0 %v426
    %v494 = vpop.f32.mrb[0].mxu0
    %v495 = vadd.f32 0.0, %v494
    %v496 = vpop.f32.mrb[0].mxu0
    %497 = vdwg.mxu0
    %v499 = vrot.slane %v495, 4
    %v501 = vadd.f32 %v206, %v499
    %v502 = vxor.u32 %v501, 2147483648
    %v503 = vmul.f32 %v502, 1.442695
    %v504 = vpow.pop %v503
    %v505 = vadd.f32 %v504, 1.0
    %v506 = vrcp.pop %v505
    %v507 = vmul.f32 1.0, %v506
    %v508 = vtanh.pop %v501
    %v510 = vrot.slane %v415, 6
    %v512 = vmul.f32 %v507, %v510
    %514 = vrot.lane.b32.xlu0 %v508, 64
    %v515 = vpop.permute.xlu0 %514
    %v517 = vmul.f32 %v507, %v515
    %519 = vrot.lane.b32.xlu0 %v517, 32
    %v520 = vpop.permute.xlu0 %519
    %v522 = vadd.f32 %v512, %v520
    %v523 = vtanh.pop %v522
    %525 = vrot.lane.b32.xlu0 %v523, 64
    %v526 = vpop.permute.xlu0 %525
    %v528 = vmul.f32 %v507, %v526
    %v530 = vrot.slane %v528, 4
    %531 = vrot.lane.b32.xlu0 %v530, 32
    %v532 = vpop.permute.xlu0 %531
    %v533 = vsel %vm41, %v532, 0
    %535 = vmatprep.subr.mxu0 0.0
    %536 = vmatpush1.msra.mxu0 %v214
    %537 = vmatprep.subr.mxu0 0.0
    %538 = vmatpush1.msra.mxu0 %v215
    %539 = vmatprep.subr.mxu0 0.0
    %540 = vmatpush1.msra.mxu0 %v216
    %541 = vmatprep.subr.mxu0 0.0
    %542 = vmatpush1.msra.mxu0 %v217
    %543 = vmatprep.subr.mxu0 0.0
    %544 = vmatpush1.msra.mxu0 0.0
    %545 = vmatprep.subr.mxu0 0.0
    %546 = vmatpush1.msra.mxu0 0.0
    %547 = vmatprep.subr.mxu0 0.0
    %548 = vmatpush1.msra.mxu0 0.0
    %549 = vmatprep.subr.mxu0 0.0
    %550 = vmatpush1.msra.mxu0 0.0
    %551 = vmatprep.subr.mxu0 0.0
    %552 = vmatpush1.msra.mxu0 0.0
    %553 = vmatprep.subr.mxu0 0.0
    %554 = vmatpush1.msra.mxu0 0.0
    %555 = vmatprep.subr.mxu0 0.0
    %556 = vmatpush1.msra.mxu0 0.0
    %557 = vmatprep.subr.mxu0 0.0
    %558 = vmatpush1.msra.mxu0 0.0
    %559 = vmatprep.subr.mxu0 0.0
    %560 = vmatpush1.msra.mxu0 0.0
    %561 = vmatprep.subr.mxu0 0.0
    %562 = vmatpush1.msra.mxu0 0.0
    %563 = vmatprep.subr.mxu0 0.0
    %564 = vmatpush1.msra.mxu0 0.0
    %565 = vmatprep.subr.mxu0 0.0
    %566 = vmatpush1.msra.mxu0 0.0
    %567 = vmatprep.subr.mxu0 0.0
    %568 = vmatpush1.msra.mxu0 0.0
    %569 = vmatprep.subr.mxu0 0.0
    %570 = vmatpush1.msra.mxu0 0.0
    %571 = vmatprep.subr.mxu0 0.0
    %572 = vmatpush1.msra.mxu0 0.0
    %573 = vmatprep.subr.mxu0 0.0
    %574 = vmatpush1.msra.mxu0 0.0
    %575 = vmatprep.subr.mxu0 0.0
    %576 = vmatpush1.msra.mxu0 0.0
    %577 = vmatprep.subr.mxu0 0.0
    %578 = vmatpush1.msra.mxu0 0.0
    %579 = vmatprep.subr.mxu0 0.0
    %580 = vmatpush1.msra.mxu0 0.0
    %581 = vmatprep.subr.mxu0 0.0
    %582 = vmatpush1.msra.mxu0 0.0
    %583 = vmatprep.subr.mxu0 0.0
    %584 = vmatpush1.msra.mxu0 0.0
    %585 = vmatprep.subr.mxu0 0.0
    %586 = vmatpush1.msra.mxu0 0.0
    %587 = vmatprep.subr.mxu0 0.0
    %588 = vmatpush1.msra.mxu0 0.0
    %589 = vmatprep.subr.mxu0 0.0
    %590 = vmatpush1.msra.mxu0 0.0
    %591 = vmatprep.subr.mxu0 0.0
    %592 = vmatpush1.msra.mxu0 0.0
    %593 = vmatprep.subr.mxu0 0.0
    %594 = vmatpush1.msra.mxu0 0.0
    %595 = vmatprep.subr.mxu0 0.0
    %596 = vmatpush1.msra.mxu0 0.0
    %597 = vmatprep.subr.mxu0 0.0
    %598 = vmatpush1.msra.mxu0 0.0
    %599 = vmatprep.mubr.f32.mxu0 0.0
    %600 = vmatmul.mubr.f32.gmra.mrb[0].mxu0 %v533
    %v601 = vpop.f32.mrb[0].mxu0
    %v602 = vadd.f32 0.0, %v601
    %v603 = vpop.f32.mrb[0].mxu0
    %604 = vdwg.mxu0
    %v606 = vrot.slane %v602, 2
    %v608 = vadd.f32 %v206, %v606
    %v609 = vxor.u32 %v608, 2147483648
    %v610 = vmul.f32 %v609, 1.442695
    %v611 = vpow.pop %v610
    %v612 = vadd.f32 %v611, 1.0
    %v613 = vrcp.pop %v612
    %v614 = vmul.f32 1.0, %v613
    %v615 = vtanh.pop %v608
    %v617 = vrot.slane %v522, 6
    %v619 = vmul.f32 %v614, %v617
    %621 = vrot.lane.b32.xlu0 %v615, 64
    %v622 = vpop.permute.xlu0 %621
    %v624 = vmul.f32 %v614, %v622
    %626 = vrot.lane.b32.xlu0 %v624, 32
    %v627 = vpop.permute.xlu0 %626
    %v629 = vadd.f32 %v619, %v627
    %v630 = vtanh.pop %v629
    %632 = vrot.lane.b32.xlu0 %v630, 64
    %v633 = vpop.permute.xlu0 %632
    %v635 = vmul.f32 %v614, %v633
    %v637 = vrot.slane %v635, 6
    %638 = vrot.lane.b32.xlu0 %v637, 32
    %v639 = vpop.permute.xlu0 %638
    %v640 = vsel %vm41, %v639, 0
    %642 = vmatprep.subr.mxu0 0.0
    %643 = vmatpush1.msra.mxu0 %v214
    %644 = vmatprep.subr.mxu0 0.0
    %645 = vmatpush1.msra.mxu0 %v215
    %646 = vmatprep.subr.mxu0 0.0
    %647 = vmatpush1.msra.mxu0 %v216
    %648 = vmatprep.subr.mxu0 0.0
    %649 = vmatpush1.msra.mxu0 %v217
    %650 = vmatprep.subr.mxu0 0.0
    %651 = vmatpush1.msra.mxu0 0.0
    %652 = vmatprep.subr.mxu0 0.0
    %653 = vmatpush1.msra.mxu0 0.0
    %654 = vmatprep.subr.mxu0 0.0
    %655 = vmatpush1.msra.mxu0 0.0
    %656 = vmatprep.subr.mxu0 0.0
    %657 = vmatpush1.msra.mxu0 0.0
    %658 = vmatprep.subr.mxu0 0.0
    %659 = vmatpush1.msra.mxu0 0.0
    %660 = vmatprep.subr.mxu0 0.0
    %661 = vmatpush1.msra.mxu0 0.0
    %662 = vmatprep.subr.mxu0 0.0
    %663 = vmatpush1.msra.mxu0 0.0
    %664 = vmatprep.subr.mxu0 0.0
    %665 = vmatpush1.msra.mxu0 0.0
    %666 = vmatprep.subr.mxu0 0.0
    %667 = vmatpush1.msra.mxu0 0.0
    %668 = vmatprep.subr.mxu0 0.0
    %669 = vmatpush1.msra.mxu0 0.0
    %670 = vmatprep.subr.mxu0 0.0
    %671 = vmatpush1.msra.mxu0 0.0
    %672 = vmatprep.subr.mxu0 0.0
    %673 = vmatpush1.msra.mxu0 0.0
    %674 = vmatprep.subr.mxu0 0.0
    %675 = vmatpush1.msra.mxu0 0.0
    %676 = vmatprep.subr.mxu0 0.0
    %677 = vmatpush1.msra.mxu0 0.0
    %678 = vmatprep.subr.mxu0 0.0
    %679 = vmatpush1.msra.mxu0 0.0
    %680 = vmatprep.subr.mxu0 0.0
    %681 = vmatpush1.msra.mxu0 0.0
    %682 = vmatprep.subr.mxu0 0.0
    %683 = vmatpush1.msra.mxu0 0.0
    %684 = vmatprep.subr.mxu0 0.0
    %685 = vmatpush1.msra.mxu0 0.0
    %686 = vmatprep.subr.mxu0 0.0
    %687 = vmatpush1.msra.mxu0 0.0
    %688 = vmatprep.subr.mxu0 0.0
    %689 = vmatpush1.msra.mxu0 0.0
    %690 = vmatprep.subr.mxu0 0.0
    %691 = vmatpush1.msra.mxu0 0.0
    %692 = vmatprep.subr.mxu0 0.0
    %693 = vmatpush1.msra.mxu0 0.0
    %694 = vmatprep.subr.mxu0 0.0
    %695 = vmatpush1.msra.mxu0 0.0
    %696 = vmatprep.subr.mxu0 0.0
    %697 = vmatpush1.msra.mxu0 0.0
    %698 = vmatprep.subr.mxu0 0.0
    %699 = vmatpush1.msra.mxu0 0.0
    %700 = vmatprep.subr.mxu0 0.0
    %701 = vmatpush1.msra.mxu0 0.0
    %702 = vmatprep.subr.mxu0 0.0
    %703 = vmatpush1.msra.mxu0 0.0
    %704 = vmatprep.subr.mxu0 0.0
    %705 = vmatpush1.msra.mxu0 0.0
    %706 = vmatprep.mubr.f32.mxu0 0.0
    %707 = vmatmul.mubr.f32.gmra.mrb[0].mxu0 %v640
    %v708 = vpop.f32.mrb[0].mxu0
    %v709 = vadd.f32 0.0, %v708
    %v710 = vpop.f32.mrb[0].mxu0
    %711 = vdwg.mxu0
    %v712 = vadd.f32 %v211, %v709
    %v713 = vxor.u32 %v712, 2147483648
    %v714 = vmul.f32 %v713, 1.442695
    %v715 = vpow.pop %v714
    %v716 = vadd.f32 %v715, 1.0
    %v717 = vrcp.pop %v716
    %v718 = vmul.f32 1.0, %v717
    %v719 = vtanh.pop %v712
    %v721 = vrot.slane %v629, 6
    %v723 = vmul.f32 %v718, %v721
    %725 = vrot.lane.b32.xlu0 %v719, 64
    %v726 = vpop.permute.xlu0 %725
    %v728 = vmul.f32 %v718, %v726
    %730 = vrot.lane.b32.xlu0 %v728, 32
    %v731 = vpop.permute.xlu0 %730
    %v733 = vadd.f32 %v723, %v731
    %v734 = vtanh.pop %v733
    %736 = vrot.lane.b32.xlu0 %v734, 64
    %v737 = vpop.permute.xlu0 %736
    %v739 = vmul.f32 %v718, %v737
    %741 = vrot.lane.b32.xlu0 %v739, 32
    %v742 = vpop.permute.xlu0 %741
    %v743 = vsel %vm41, %v742, 0
    %745 = vmatprep.subr.mxu0 0.0
    %746 = vmatpush1.msra.mxu0 %v214
    %747 = vmatprep.subr.mxu0 0.0
    %748 = vmatpush1.msra.mxu0 %v215
    %749 = vmatprep.subr.mxu0 0.0
    %750 = vmatpush1.msra.mxu0 %v216
    %751 = vmatprep.subr.mxu0 0.0
    %752 = vmatpush1.msra.mxu0 %v217
    %753 = vmatprep.subr.mxu0 0.0
    %754 = vmatpush1.msra.mxu0 0.0
    %755 = vmatprep.subr.mxu0 0.0
    %756 = vmatpush1.msra.mxu0 0.0
    %757 = vmatprep.subr.mxu0 0.0
    %758 = vmatpush1.msra.mxu0 0.0
    %759 = vmatprep.subr.mxu0 0.0
    %760 = vmatpush1.msra.mxu0 0.0
    %761 = vmatprep.subr.mxu0 0.0
    %762 = vmatpush1.msra.mxu0 0.0
    %763 = vmatprep.subr.mxu0 0.0
    %764 = vmatpush1.msra.mxu0 0.0
    %765 = vmatprep.subr.mxu0 0.0
    %766 = vmatpush1.msra.mxu0 0.0
    %767 = vmatprep.subr.mxu0 0.0
    %768 = vmatpush1.msra.mxu0 0.0
    %769 = vmatprep.subr.mxu0 0.0
    %770 = vmatpush1.msra.mxu0 0.0
    %771 = vmatprep.subr.mxu0 0.0
    %772 = vmatpush1.msra.mxu0 0.0
    %773 = vmatprep.subr.mxu0 0.0
    %774 = vmatpush1.msra.mxu0 0.0
    %775 = vmatprep.subr.mxu0 0.0
    %776 = vmatpush1.msra.mxu0 0.0
    %777 = vmatprep.subr.mxu0 0.0
    %778 = vmatpush1.msra.mxu0 0.0
    %779 = vmatprep.subr.mxu0 0.0
    %780 = vmatpush1.msra.mxu0 0.0
    %781 = vmatprep.subr.mxu0 0.0
    %782 = vmatpush1.msra.mxu0 0.0
    %783 = vmatprep.subr.mxu0 0.0
    %784 = vmatpush1.msra.mxu0 0.0
    %785 = vmatprep.subr.mxu0 0.0
    %786 = vmatpush1.msra.mxu0 0.0
    %787 = vmatprep.subr.mxu0 0.0
    %788 = vmatpush1.msra.mxu0 0.0
    %789 = vmatprep.subr.mxu0 0.0
    %790 = vmatpush1.msra.mxu0 0.0
    %791 = vmatprep.subr.mxu0 0.0
    %792 = vmatpush1.msra.mxu0 0.0
    %793 = vmatprep.subr.mxu0 0.0
    %794 = vmatpush1.msra.mxu0 0.0
    %795 = vmatprep.subr.mxu0 0.0
    %796 = vmatpush1.msra.mxu0 0.0
    %797 = vmatprep.subr.mxu0 0.0
    %798 = vmatpush1.msra.mxu0 0.0
    %799 = vmatprep.subr.mxu0 0.0
    %800 = vmatpush1.msra.mxu0 0.0
    %801 = vmatprep.subr.mxu0 0.0
    %802 = vmatpush1.msra.mxu0 0.0
    %803 = vmatprep.subr.mxu0 0.0
    %804 = vmatpush1.msra.mxu0 0.0
    %805 = vmatprep.subr.mxu0 0.0
    %806 = vmatpush1.msra.mxu0 0.0
    %807 = vmatprep.subr.mxu0 0.0
    %808 = vmatpush1.msra.mxu0 0.0
    %809 = vmatprep.mubr.f32.mxu0 0.0
    %810 = vmatmul.mubr.f32.gmra.mrb[0].mxu0 %v743
    %v811 = vpop.f32.mrb[0].mxu0
    %v812 = vadd.f32 0.0, %v811
    %v813 = vpop.f32.mrb[0].mxu0
    %814 = vdwg.mxu0
    %v816 = vrot.slane %v812, 6
    %v818 = vadd.f32 %v211, %v816
    %v819 = vxor.u32 %v818, 2147483648
    %v820 = vmul.f32 %v819, 1.442695
    %v821 = vpow.pop %v820
    %v822 = vadd.f32 %v821, 1.0
    %v823 = vrcp.pop %v822
    %v824 = vmul.f32 1.0, %v823
    %v825 = vtanh.pop %v818
    %v827 = vrot.slane %v733, 6
    %v829 = vmul.f32 %v824, %v827
    %831 = vrot.lane.b32.xlu0 %v825, 64
    %v832 = vpop.permute.xlu0 %831
    %v834 = vmul.f32 %v824, %v832
    %836 = vrot.lane.b32.xlu0 %v834, 32
    %v837 = vpop.permute.xlu0 %836
    %v839 = vadd.f32 %v829, %v837
    %v840 = vtanh.pop %v839
    %842 = vrot.lane.b32.xlu0 %v840, 64
    %v843 = vpop.permute.xlu0 %842
    %v845 = vmul.f32 %v824, %v843
    %v847 = vrot.slane %v845, 2
    %848 = vrot.lane.b32.xlu0 %v847, 32
    %v849 = vpop.permute.xlu0 %848
    %v850 = vsel %vm41, %v849, 0
    %852 = vmatprep.subr.mxu0 0.0
    %853 = vmatpush1.msra.mxu0 %v214
    %854 = vmatprep.subr.mxu0 0.0
    %855 = vmatpush1.msra.mxu0 %v215
    %856 = vmatprep.subr.mxu0 0.0
    %857 = vmatpush1.msra.mxu0 %v216
    %858 = vmatprep.subr.mxu0 0.0
    %859 = vmatpush1.msra.mxu0 %v217
    %860 = vmatprep.subr.mxu0 0.0
    %861 = vmatpush1.msra.mxu0 0.0
    %862 = vmatprep.subr.mxu0 0.0
    %863 = vmatpush1.msra.mxu0 0.0
    %864 = vmatprep.subr.mxu0 0.0
    %865 = vmatpush1.msra.mxu0 0.0
    %866 = vmatprep.subr.mxu0 0.0
    %867 = vmatpush1.msra.mxu0 0.0
    %868 = vmatprep.subr.mxu0 0.0
    %869 = vmatpush1.msra.mxu0 0.0
    %870 = vmatprep.subr.mxu0 0.0
    %871 = vmatpush1.msra.mxu0 0.0
    %872 = vmatprep.subr.mxu0 0.0
    %873 = vmatpush1.msra.mxu0 0.0
    %874 = vmatprep.subr.mxu0 0.0
    %875 = vmatpush1.msra.mxu0 0.0
    %876 = vmatprep.subr.mxu0 0.0
    %877 = vmatpush1.msra.mxu0 0.0
    %878 = vmatprep.subr.mxu0 0.0
    %879 = vmatpush1.msra.mxu0 0.0
    %880 = vmatprep.subr.mxu0 0.0
    %881 = vmatpush1.msra.mxu0 0.0
    %882 = vmatprep.subr.mxu0 0.0
    %883 = vmatpush1.msra.mxu0 0.0
    %884 = vmatprep.subr.mxu0 0.0
    %885 = vmatpush1.msra.mxu0 0.0
    %886 = vmatprep.subr.mxu0 0.0
    %887 = vmatpush1.msra.mxu0 0.0
    %888 = vmatprep.subr.mxu0 0.0
    %889 = vmatpush1.msra.mxu0 0.0
    %890 = vmatprep.subr.mxu0 0.0
    %891 = vmatpush1.msra.mxu0 0.0
    %892 = vmatprep.subr.mxu0 0.0
    %893 = vmatpush1.msra.mxu0 0.0
    %894 = vmatprep.subr.mxu0 0.0
    %895 = vmatpush1.msra.mxu0 0.0
    %896 = vmatprep.subr.mxu0 0.0
    %897 = vmatpush1.msra.mxu0 0.0
    %898 = vmatprep.subr.mxu0 0.0
    %899 = vmatpush1.msra.mxu0 0.0
    %900 = vmatprep.subr.mxu0 0.0
    %901 = vmatpush1.msra.mxu0 0.0
    %902 = vmatprep.subr.mxu0 0.0
    %903 = vmatpush1.msra.mxu0 0.0
    %904 = vmatprep.subr.mxu0 0.0
    %905 = vmatpush1.msra.mxu0 0.0
    %906 = vmatprep.subr.mxu0 0.0
    %907 = vmatpush1.msra.mxu0 0.0
    %908 = vmatprep.subr.mxu0 0.0
    %909 = vmatpush1.msra.mxu0 0.0
    %910 = vmatprep.subr.mxu0 0.0
    %911 = vmatpush1.msra.mxu0 0.0
    %912 = vmatprep.subr.mxu0 0.0
    %913 = vmatpush1.msra.mxu0 0.0
    %914 = vmatprep.subr.mxu0 0.0
    %915 = vmatpush1.msra.mxu0 0.0
    %916 = vmatprep.mubr.f32.mxu0 0.0
    %917 = vmatmul.mubr.f32.gmra.mrb[0].mxu0 %v850
    %v918 = vpop.f32.mrb[0].mxu0
    %v919 = vadd.f32 0.0, %v918
    %v920 = vpop.f32.mrb[0].mxu0
    %921 = vdwg.mxu0
    %v923 = vrot.slane %v919, 4
    %v925 = vadd.f32 %v211, %v923
    %v926 = vxor.u32 %v925, 2147483648
    %v927 = vmul.f32 %v926, 1.442695
    %v928 = vpow.pop %v927
    %v929 = vadd.f32 %v928, 1.0
    %v930 = vrcp.pop %v929
    %v931 = vmul.f32 1.0, %v930
    %v932 = vtanh.pop %v925
    %v934 = vrot.slane %v839, 6
    %v936 = vmul.f32 %v931, %v934
    %938 = vrot.lane.b32.xlu0 %v932, 64
    %v939 = vpop.permute.xlu0 %938
    %v941 = vmul.f32 %v931, %v939
    %943 = vrot.lane.b32.xlu0 %v941, 32
    %v944 = vpop.permute.xlu0 %943
    %v946 = vadd.f32 %v936, %v944
    %v947 = vtanh.pop %v946
    %949 = vrot.lane.b32.xlu0 %v947, 64
    %v950 = vpop.permute.xlu0 %949
    %v952 = vmul.f32 %v931, %v950
    %v954 = vrot.slane %v952, 4
    %955 = vrot.lane.b32.xlu0 %v954, 32
    %v956 = vpop.permute.xlu0 %955
    %v957 = vsel %vm41, %v956, 0
    %959 = vmatprep.subr.mxu0 0.0
    %960 = vmatpush1.msra.mxu0 %v214
    %961 = vmatprep.subr.mxu0 0.0
    %962 = vmatpush1.msra.mxu0 %v215
    %963 = vmatprep.subr.mxu0 0.0
    %964 = vmatpush1.msra.mxu0 %v216
    %965 = vmatprep.subr.mxu0 0.0
    %966 = vmatpush1.msra.mxu0 %v217
    %967 = vmatprep.subr.mxu0 0.0
    %968 = vmatpush1.msra.mxu0 0.0
    %969 = vmatprep.subr.mxu0 0.0
    %970 = vmatpush1.msra.mxu0 0.0
    %971 = vmatprep.subr.mxu0 0.0
    %972 = vmatpush1.msra.mxu0 0.0
    %973 = vmatprep.subr.mxu0 0.0
    %974 = vmatpush1.msra.mxu0 0.0
    %975 = vmatprep.subr.mxu0 0.0
    %976 = vmatpush1.msra.mxu0 0.0
    %977 = vmatprep.subr.mxu0 0.0
    %978 = vmatpush1.msra.mxu0 0.0
    %979 = vmatprep.subr.mxu0 0.0
    %980 = vmatpush1.msra.mxu0 0.0
    %981 = vmatprep.subr.mxu0 0.0
    %982 = vmatpush1.msra.mxu0 0.0
    %983 = vmatprep.subr.mxu0 0.0
    %984 = vmatpush1.msra.mxu0 0.0
    %985 = vmatprep.subr.mxu0 0.0
    %986 = vmatpush1.msra.mxu0 0.0
    %987 = vmatprep.subr.mxu0 0.0
    %988 = vmatpush1.msra.mxu0 0.0
    %989 = vmatprep.subr.mxu0 0.0
    %990 = vmatpush1.msra.mxu0 0.0
    %991 = vmatprep.subr.mxu0 0.0
    %992 = vmatpush1.msra.mxu0 0.0
    %993 = vmatprep.subr.mxu0 0.0
    %994 = vmatpush1.msra.mxu0 0.0
    %995 = vmatprep.subr.mxu0 0.0
    %996 = vmatpush1.msra.mxu0 0.0
    %997 = vmatprep.subr.mxu0 0.0
    %998 = vmatpush1.msra.mxu0 0.0
    %999 = vmatprep.subr.mxu0 0.0
    %1000 = vmatpush1.msra.mxu0 0.0
    %1001 = vmatprep.subr.mxu0 0.0
    %1002 = vmatpush1.msra.mxu0 0.0
    %1003 = vmatprep.subr.mxu0 0.0
    %1004 = vmatpush1.msra.mxu0 0.0
    %1005 = vmatprep.subr.mxu0 0.0
    %1006 = vmatpush1.msra.mxu0 0.0
    %1007 = vmatprep.subr.mxu0 0.0
    %1008 = vmatpush1.msra.mxu0 0.0
    %1009 = vmatprep.subr.mxu0 0.0
    %1010 = vmatpush1.msra.mxu0 0.0
    %1011 = vmatprep.subr.mxu0 0.0
    %1012 = vmatpush1.msra.mxu0 0.0
    %1013 = vmatprep.subr.mxu0 0.0
    %1014 = vmatpush1.msra.mxu0 0.0
    %1015 = vmatprep.subr.mxu0 0.0
    %1016 = vmatpush1.msra.mxu0 0.0
    %1017 = vmatprep.subr.mxu0 0.0
    %1018 = vmatpush1.msra.mxu0 0.0
    %1019 = vmatprep.subr.mxu0 0.0
    %1020 = vmatpush1.msra.mxu0 0.0
    %1021 = vmatprep.subr.mxu0 0.0
    %1022 = vmatpush1.msra.mxu0 0.0
    %1023 = vmatprep.mubr.f32.mxu0 0.0
    %1024 = vmatmul.mubr.f32.gmra.mrb[0].mxu0 %v957
    %v1025 = vpop.f32.mrb[0].mxu0
    %v1026 = vadd.f32 0.0, %v1025
    %v1027 = vpop.f32.mrb[0].mxu0
    %1028 = vdwg.mxu0
    %v1030 = vrot.slane %v1026, 2
    %v1032 = vadd.f32 %v211, %v1030
    %v1033 = vxor.u32 %v1032, 2147483648
    %v1034 = vmul.f32 %v1033, 1.442695
    %v1035 = vpow.pop %v1034
    %v1036 = vadd.f32 %v1035, 1.0
    %v1037 = vrcp.pop %v1036
    %v1038 = vmul.f32 1.0, %v1037
    %v1039 = vtanh.pop %v1032
    %v1041 = vrot.slane %v946, 6
    %v1043 = vmul.f32 %v1038, %v1041
    %1045 = vrot.lane.b32.xlu0 %v1039, 64
    %v1046 = vpop.permute.xlu0 %1045
    %v1048 = vmul.f32 %v1038, %v1046
    %1050 = vrot.lane.b32.xlu0 %v1048, 32
    %v1051 = vpop.permute.xlu0 %1050
    %v1053 = vadd.f32 %v1043, %v1051
    %v1054 = vtanh.pop %v1053
    %1056 = vrot.lane.b32.xlu0 %v1054, 64
    %v1057 = vpop.permute.xlu0 %1056
    %v1059 = vmul.f32 %v1038, %v1057
    %1061 = vrot.lane.b32.xlu0 %v1059, 32
    %v1062 = vpop.permute.xlu0 %1061
    %vm1064 = vcmask 261126
    %1065 = vst.msk [vmem:[#allocation2 - $0x6] sm:$0xc0] %vm1064, %v1062
    // Predicated region
    $region22: #{tpu_custom_call.1} parent=1 // pred_check
      _
    $region23: #{tpu_custom_call.1} parent=1 // pred_check_branch
      %1067 = sbr.rel (0) target = $region25
    $region24: #{tpu_custom_call.1} parent=1 // pred_region
      %s1069 = ssub.s32 32, 32
      %1070 = vsyncadd [#allocation3], %s1069
      %s1072 = sshll.u32 [#allocation2], 4
      %s1073 = int_to_ptr.vmem [resolvable:$true] %s1072
      %1075 = dma.vmem_to_hbm [thread:$0]  %s1073, 32, %s5, [#allocation3]
    $region25: #{tpu_custom_call.1} parent=1 // pred_fallthru
      _
    // Predicated region
    $region26: #{tpu_custom_call.1} parent=1 // pred_check
      _
    $region27: #{tpu_custom_call.1} parent=1 // pred_check_branch
      %1077 = sbr.rel (0) target = $region29
    $region28: #{tpu_custom_call.1} parent=1 // pred_region
      %1078 = dma.done [#allocation3], 32
    $region29: #{tpu_custom_call.1} parent=1 // pred_fallthru
      _
    %1079 = vsyncpa [#allocation3], 1

</llo_original>
